<compile_context>
chip_gen: v7x
topology: tpu7x:2x2x1
jax: 0.10.0
libtpu: 0.0.40
codegen_flags: <defaults>
</compile_context>

<pallas_src>
import jax
import jax.numpy as jnp
from jax.experimental import pallas as pl
from jax.experimental.pallas import tpu as pltpu

_TARGET_BLOCK_BYTES = 8 * 1024 * 1024   # ~8 MiB/block; 4 buffers ~= 32 MiB VMEM
_MAX_LANE_DIM = 4096                    # cap on the collapsed lane (last) dim
_PAD_LANES = 1024                       # lane width for the rare pad fallback


def _hswish_kernel(x_ref, o_ref):
    # f32 internal compute (free: kernel is HBM-bound on v5e/v6e/v7x) so bf16
    # inputs match a float32 reference; cast back on store.
    x = x_ref[...].astype(jnp.float32)
    r6 = jnp.clip(x + 3.0, 0.0, 6.0)          # relu6(x + 3)
    o_ref[...] = (x * r6 * (1.0 / 6.0)).astype(o_ref.dtype)


def _round_up(v, m):
    return ((v + m - 1) // m) * m


def _choose_layout(shape, n):
    """Pick a copy-free 2-D (rows, lanes) view. Returns (rows, lanes, needs_pad)."""
    # 1) Flat size is a multiple of 128: take the widest multiple-of-128
    #    divisor (capped) as the lane dim -> unmasked lane-dense stores, no pad.
    if n % 128 == 0:
        lanes = 128
        for k in range(min(n // 128, _MAX_LANE_DIM // 128), 0, -1):
            if n % (k * 128) == 0:
                lanes = k * 128
                break
        return n // lanes, lanes, False
    # 2) Otherwise collapse trailing dims into the lane dim.  A block whose
    #    last dim equals the full array last dim is always legal, so no pad /
    #    no output slice; only the final 128-lane group of each row is masked.
    suffix = 1
    best = None
    for d in reversed(shape):
        suffix *= int(d)
        if suffix <= _MAX_LANE_DIM:
            best = suffix
        else:
            break
    if best is None:
        best = int(shape[-1])
    if _round_up(best, 128) <= 2 * best:       # >= 50% lane utilization
        return n // best, best, False
    # 3) Rare fallback (tiny ragged last dims, e.g. (N, 3)): pad to a multiple
    #    of 1024 and slice on output.  Extra HBM passes, but avoids becoming
    #    store-slot bound on ~2% lane utilization.  Pad value 0 is safe since
    #    hswish(0) == 0.
    return pl.cdiv(n, _PAD_LANES), _PAD_LANES, True


def _pick_tile_rows(rows, lanes_padded, itemsize):
    tile = max(8, _TARGET_BLOCK_BYTES // (lanes_padded * itemsize))
    tile = (tile // 8) * 8                     # sublane-aligned
    if tile >= rows:
        if rows > 8:
            # Split into >= 2 blocks (multiple of 8 rows) so both v7x
            # TensorCores get work under dimension_semantics=("parallel",).
            tile = _round_up(-(-rows // 2), 8)
            if tile >= rows:
                tile = rows
        else:
            tile = rows                        # full-extent block (legal)
    return tile


@jax.jit
def hswish(x):
    """Elementwise hard-swish (x * relu6(x + 3) / 6). Accepts any shape."""
    orig_shape = x.shape
    orig_dtype = x.dtype
    n = x.size
    if n == 0:
        return x

    itemsize = jnp.dtype(orig_dtype).itemsize
    rows, lanes, needs_pad = _choose_layout(orig_shape, n)

    x_flat = jnp.ravel(x)
    if needs_pad:
        x_flat = jnp.pad(x_flat, (0, rows * lanes - n))
    x2d = x_flat.reshape(rows, lanes)

    lanes_padded = _round_up(lanes, 128)       # per-row VMEM footprint
    tile_rows = _pick_tile_rows(rows, lanes_padded, itemsize)
    grid = (pl.cdiv(rows, tile_rows),)         # partial last block masked by Pallas

    block_bytes = tile_rows * lanes_padded * itemsize
    # Cover in+out double-buffering with headroom; >= 32 MiB (raises v5e's
    # 16 MiB scoped default), <= 48 MiB (fits v7x's 64 MiB physical VMEM).
    vmem_limit_bytes = int(min(48 << 20, max(32 << 20, 4 * block_bytes + (8 << 20))))

    # NOTE: in production, input_output_aliases={0: 0} can donate x2d into the
    # output to halve peak HBM footprint (no bandwidth change); left off so
    # the caller's input stays valid for the reference check.
    out = pl.pallas_call(
        _hswish_kernel,
        out_shape=jax.ShapeDtypeStruct((rows, lanes), orig_dtype),
        grid_spec=pltpu.PrefetchScalarGridSpec(
            num_scalar_prefetch=0,
            grid=grid,
            in_specs=[pl.BlockSpec((tile_rows, lanes), lambda i: (i, 0))],
            out_specs=pl.BlockSpec((tile_rows, lanes), lambda i: (i, 0)),
        ),
        compiler_params=pltpu.CompilerParams(
            dimension_semantics=("parallel",),
            vmem_limit_bytes=vmem_limit_bytes,
        ),
    )(x2d)

    if needs_pad:
        return out.reshape(-1)[:n].reshape(orig_shape)
    return out.reshape(orig_shape)             # copy-free


def hswish_ref(x):
    xf = x.astype(jnp.float32)
    return (xf * jnp.clip(xf + 3.0, 0.0, 6.0) / 6.0).astype(x.dtype)


def _check(x, atol=1e-5, rtol=1e-5):
    y = hswish(x)
    jax.block_until_ready(y)
    y_ref = hswish_ref(x)
    assert y.shape == x.shape and y.dtype == x.dtype
    assert jnp.allclose(y.astype(jnp.float32), y_ref.astype(jnp.float32),
                        atol=atol, rtol=rtol)


if __name__ == "__main__":
    key = jax.random.PRNGKey(0)
    k0, k1, k2, k3, k4, k5 = jax.random.split(key, 6)

    # Primary test: NCHW, matching PyTorch conv-style inputs (divisor path).
    x = jax.random.normal(k0, (2, 4, 16, 16), dtype=jnp.float32) * 3.0
    _check(x)

    # Ragged total size: trailing-dim collapse path (no pad, no slice).
    x_odd = jax.random.normal(k1, (3, 5, 7, 11), dtype=jnp.float32) * 3.0
    _check(x_odd)

    # Larger ragged: suffix path with a 2-block grid and masked last block.
    x_big = jax.random.normal(k2, (2, 3, 300, 301), dtype=jnp.float32) * 3.0
    _check(x_big)

    # Divisible size that splits into >= 2 lane-dense blocks (megacore path).
    x_par = jax.random.normal(k3, (2, 16, 64, 128), dtype=jnp.float32) * 3.0
    _check(x_par)

    # Tiny ragged last dim: exercises the rare pad+slice fallback.
    x_pad = jax.random.normal(k4, (4100, 3), dtype=jnp.float32) * 3.0
    _check(x_pad)

    # bfloat16 input: kernel computes in f32 internally, stores bf16.
    x_bf16 = (jax.random.normal(k5, (2, 4, 16, 16), dtype=jnp.float32) * 3.0
              ).astype(jnp.bfloat16)
    _check(x_bf16, atol=1e-2, rtol=1e-2)

    print("KERNEL_OK")
</pallas_src>

<mosaic_0001>
module attributes {stable_mosaic.version = 11 : i64} {
  func.func @_hswish_kernel(%arg0: i32, %arg1: memref<1x2048xf32, #tpu.memory_space<vmem>>, %arg2: memref<1x2048xf32, #tpu.memory_space<vmem>>) attributes {dimension_semantics = [#tpu.dimension_semantics<parallel>], iteration_bounds = array<i64: 1>, scalar_prefetch = 0 : i64, scratch_operands = 0 : i64, tpu.core_type = #tpu.core_type<tc>, window_params = [{transform_indices = @transform_0, window_bounds = array<i64: 1, 2048>}, {transform_indices = @transform_1, window_bounds = array<i64: 1, 2048>}]} {
    %c0 = arith.constant 0 : index
    %c0_0 = arith.constant 0 : index
    %0 = vector.load %arg1[%c0, %c0_0] : memref<1x2048xf32, #tpu.memory_space<vmem>>, vector<1x2048xf32>
    %cst = arith.constant 3.000000e+00 : f32
    %1 = vector.broadcast %cst : f32 to vector<1x2048xf32>
    %2 = arith.addf %0, %1 : vector<1x2048xf32>
    %cst_1 = arith.constant 0.000000e+00 : f32
    %cst_2 = arith.constant 6.000000e+00 : f32
    %3 = vector.broadcast %cst_1 : f32 to vector<1x2048xf32>
    %4 = arith.maximumf %3, %2 : vector<1x2048xf32>
    %5 = vector.broadcast %cst_2 : f32 to vector<1x2048xf32>
    %6 = arith.minimumf %5, %4 : vector<1x2048xf32>
    %7 = arith.mulf %0, %6 : vector<1x2048xf32>
    %cst_3 = arith.constant 0.166666672 : f32
    %8 = vector.broadcast %cst_3 : f32 to vector<1x2048xf32>
    %9 = arith.mulf %7, %8 : vector<1x2048xf32>
    %c0_4 = arith.constant 0 : index
    %c0_5 = arith.constant 0 : index
    %10 = vector.load %arg2[%c0_4, %c0_5] : memref<1x2048xf32, #tpu.memory_space<vmem>>, vector<1x2048xf32>
    tpu.vector_store %arg2[%c0_4, %c0_5], %9 {strides = array<i32>} : memref<1x2048xf32, #tpu.memory_space<vmem>>, vector<1x2048xf32>,
    return
  }
  func.func @transform_0(%arg0: i32) -> (i32, i32) {
    %c0_i32 = arith.constant 0 : i32
    %c0_i32_0 = arith.constant 0 : i32
    return %arg0, %c0_i32 : i32, i32
  }
  func.func @transform_1(%arg0: i32) -> (i32, i32) {
    %c0_i32 = arith.constant 0 : i32
    %c0_i32_0 = arith.constant 0 : i32
    return %arg0, %c0_i32 : i32, i32
  }
}

</mosaic_0001>

<llo_original>
// kernel: hswish.1
$region0: #{hswish.1}
  #allocation0 [shape = 'u32[]', space=smem, size = 0x4, offset = 0x4, fixed_abs, tag = 'smem constant byte address 0x4 - core index']
  #allocation1 [shape = 'u32[144,128]{1,0:T(1,128)}', space=vmem, size = 0x12000, scoped, tag = 'internal scratch']
  %s0 = inlined_call_operand.vmem [shape: f32[1,2048], index: 0, kind: input, shape index: {}]
  %s1 = inlined_call_operand.vmem [shape: f32[1,2048], index: 1, kind: output, shape index: {}]
  %s2 = sld [smem:[#allocation0]]
  $region14: #{hswish.1} parent=0
    _
  %s4 = ssub.s32 1, %s2
  %s5 = scalar_select 0, %s4, %s2
  // Predicated region
  $region2: #{hswish.1} parent=0 // pred_check
    _
  $region3: #{hswish.1} parent=0 // pred_check_branch
    %7 = sbr.rel (0) target = $region5
  $region4: #{hswish.1} parent=0 // pred_region
    _
  $region5: #{hswish.1} parent=0 // pred_fallthru
    _
  %v8 = vld [vmem:[%s0] sm:$0xff]
  %v9 = vld [vmem:[%s0 + $0x8] sm:$0xff]
  %v10 = vadd.f32 %v8, 3.0
  %v11 = vadd.f32 %v9, 3.0
  %v12 = vmax.f32 %v10, 0.0
  %v13 = vmax.f32 %v11, 0.0
  %v14 = vmin.f32 %v12, 6.0
  %v15 = vmin.f32 %v13, 6.0
  %v16 = vmul.f32 %v8, %v14
  %v17 = vmul.f32 %v9, %v15
  %v18 = vmul.f32 %v16, 0.16666667
  %v19 = vmul.f32 %v17, 0.16666667
  %20 = vst [vmem:[%s1] sm:$0xff] %v18
  %21 = vst [vmem:[%s1 + $0x8] sm:$0xff] %v19
  // Predicated region
  $region6: #{hswish.1} parent=0 // pred_check
    _
  $region7: #{hswish.1} parent=0 // pred_check_branch
    %23 = sbr.rel (0) target = $region9
  $region8: #{hswish.1} parent=0 // pred_region
    _
  $region9: #{hswish.1} parent=0 // pred_fallthru
    _
  // Predicated region
  $region10: #{hswish.1} parent=0 // pred_check
    _
  $region11: #{hswish.1} parent=0 // pred_check_branch
    %25 = sbr.rel (0) target = $region13
  $region12: #{hswish.1} parent=0 // pred_region
    _
  $region13: #{hswish.1} parent=0 // pred_fallthru
    _

</llo_original>
